<compile_context>
chip_gen: v7x
topology: tpu7x:2x2x1
jax: 0.10.0
libtpu: 0.0.40
codegen_flags: <defaults>
</compile_context>

<pallas_src>
import functools

import jax
import jax.numpy as jnp
from jax import lax
from jax.experimental import pallas as pl
from jax.experimental.pallas import tpu as pltpu


# ----------------------------- VMEM budgets ---------------------------------

def _vmem_capacity_bytes():
    try:
        info = pltpu.get_tpu_info()
        cap = getattr(info, "vmem_capacity_bytes", None)
        if cap:
            return int(cap)
    except Exception:
        pass
    return 64 << 20  # conservative: v7x physical per-TC VMEM


_VMEM_CAP = _vmem_capacity_bytes()
# fused path: x block <= cap/10  (2x in + 2x out double-buffered ~ 0.4*cap)
# streaming : per-block <= cap/16 (in + out, double buffered ~ 0.25*cap)
_FUSED_SLAB_BUDGET = _VMEM_CAP // 10
_PASS_BLOCK_BUDGET = _VMEM_CAP // 16
_VMEM_LIMIT = int(_VMEM_CAP * 0.70)


def _compiler_params(dimension_semantics):
    return pltpu.CompilerParams(
        dimension_semantics=dimension_semantics,
        vmem_limit_bytes=_VMEM_LIMIT,
    )


# ----------------------------- tile choosers --------------------------------

def _largest_aligned_divisor(dim, unit, cap):
    """Largest multiple of `unit` that divides `dim` and is <= cap, or None."""
    best = None
    t = unit
    limit = min(cap, dim)
    while t <= limit:
        if dim % t == 0:
            best = t
        t += unit
    return best


def _choose_fused_batch_tile(n, per_batch_bytes, budget):
    """Batch tile for the fused path, or None if even one batch doesn't fit."""
    if per_batch_bytes > budget:
        return None
    max_tn = max(1, int(budget // per_batch_bytes))
    fitting = [d for d in range(1, n + 1) if n % d == 0 and d <= max_tn]
    if not fitting:
        return None
    # Prefer >= 2 grid steps when N >= 2 so megacore (v7x) shards the pass.
    pref = [d for d in fitting if n // d >= 2]
    return max(pref) if pref else max(fitting)


def _choose_mean_hw_tile(c, hw, itemsize, budget):
    """HW tile for the (1, C, t_hw) mean block (multiple of 128 or full)."""
    if c * hw * itemsize <= budget or hw < 128:
        return hw
    t = max(128, (budget // (c * itemsize)) // 128 * 128)
    t = min(t, (hw // 128) * 128)
    d = _largest_aligned_divisor(hw, 128, t)
    return d if d is not None else t


def _choose_scale_tiles(nc, hw, itemsize, budget):
    """(t_nc, t_hw) for the lane-dense (N*C, HW) scale pass."""
    if hw * itemsize * 8 <= budget or hw < 128:
        t_hw = hw                       # full rows: always layout-legal
    else:
        t_hw = max(128, (budget // (8 * itemsize)) // 128 * 128)
        t_hw = min(t_hw, (hw // 128) * 128)
        d = _largest_aligned_divisor(hw, 128, t_hw)
        if d is not None:
            t_hw = d
    max_nc = max(8, budget // (t_hw * itemsize))
    if nc <= max_nc:
        t_nc = nc
    else:
        t_nc = max(8, (max_nc // 8) * 8)
        d = _largest_aligned_divisor(nc, 8, t_nc)
        if d is not None:
            t_nc = d
    return int(t_nc), int(t_hw)


# ------------------------------- kernels -------------------------------------

def _fused_se_kernel(x_ref, w1_ref, w2_ref, o_ref, *, inv_hw):
    # x_ref/o_ref: (t_n, C, HW) resident slab; w1: (C_red, C); w2: (C, C_red)
    y = jnp.sum(x_ref[...].astype(jnp.float32), axis=-1) * inv_hw      # (t_n, C)
    # nn.Linear is y @ W.T with W stored (out, in): contract last-vs-last,
    # so no weight transpose is materialized.
    h = lax.dot_general(y, w1_ref[...], (((1,), (1,)), ((), ())),
                        preferred_element_type=jnp.float32)
    h = jnp.maximum(h, 0.0)
    s = lax.dot_general(h, w2_ref[...], (((1,), (1,)), ((), ())),
                        preferred_element_type=jnp.float32)
    g = jax.nn.sigmoid(s)                                              # (t_n, C)
    o_ref[...] = (x_ref[...].astype(jnp.float32) * g[:, :, None]).astype(o_ref.dtype)


def _mean_kernel(x_ref, mean_ref, acc_ref, *, hw, inv_hw, t_hw, mask_tail):
    # x_ref: (1, C, t_hw); mean_ref: (1, 1, C); acc_ref: (1, C) f32 scratch.
    k = pl.program_id(1)

    @pl.when(k == 0)
    def _():
        acc_ref[...] = jnp.zeros_like(acc_ref)

    xf = x_ref[...].astype(jnp.float32)
    if mask_tail:
        # Non-dividing HW tiling: zero the padded tail before accumulating.
        pos = k * t_hw + lax.broadcasted_iota(jnp.int32, xf.shape, 2)
        xf = jnp.where(pos < hw, xf, 0.0)
    # TODO(synk): on v7x a lane-partial (1, C, 128) accumulator would move the
    # per-tile cross-lane reduce off the streaming path; kept simple here.
    acc_ref[...] += jnp.sum(xf, axis=-1)

    @pl.when(k == pl.num_programs(1) - 1)
    def _():
        mean_ref[...] = (acc_ref[...] * inv_hw)[:, None, :]


def _scale_kernel(x_ref, g_ref, o_ref):
    # x_ref: (t_nc, t_hw); g_ref: (t_nc, 1) f32 gate; o_ref: (t_nc, t_hw)
    o_ref[...] = (x_ref[...].astype(jnp.float32) * g_ref[...]).astype(o_ref.dtype)


# ------------------------------- wrapper --------------------------------------

def se_block(x, w1, w2, *, force_two_pass=False, block_budget_bytes=None):
    """x: (N, C, H, W); w1: (C//r, C); w2: (C, C//r). Returns (N, C, H, W)."""
    n, c, h, w = x.shape
    hw = h * w
    nc = n * c
    c_red = w1.shape[0]
    itemsize = x.dtype.itemsize
    inv_hw = 1.0 / float(hw)

    fused_budget = block_budget_bytes or _FUSED_SLAB_BUDGET
    pass_budget = block_budget_bytes or _PASS_BLOCK_BUDGET

    x3 = x.reshape(n, c, hw)

    # ---------------- Fused single pass (primary path) ----------------
    t_n = None if force_two_pass else _choose_fused_batch_tile(
        n, c * hw * itemsize, fused_budget)
    if t_n is not None:
        out3 = pl.pallas_call(
            functools.partial(_fused_se_kernel, inv_hw=inv_hw),
            out_shape=jax.ShapeDtypeStruct((n, c, hw), x.dtype),
            grid_spec=pltpu.PrefetchScalarGridSpec(
                num_scalar_prefetch=0,
                grid=(n // t_n,),
                in_specs=[
                    pl.BlockSpec((t_n, c, hw), lambda i: (i, 0, 0)),
                    pl.BlockSpec((c_red, c), lambda i: (0, 0)),
                    pl.BlockSpec((c, c_red), lambda i: (0, 0)),
                ],
                out_specs=pl.BlockSpec((t_n, c, hw), lambda i: (i, 0, 0)),
            ),
            compiler_params=_compiler_params(("parallel",)),
            cost_estimate=pl.CostEstimate(
                flops=2 * n * c * hw + 4 * n * c * c_red,
                transcendentals=n * c,
                bytes_accessed=2 * n * c * hw * itemsize
                + (w1.size + w2.size) * 4,
            ),
        )(x3, w1, w2)
        return out3.reshape(n, c, h, w)

    # ---------------- Two-pass fallback (large activations) ----------------
    # Pass A: tiled spatial mean -> (N, 1, C) f32.
    t_hw_m = _choose_mean_hw_tile(c, hw, itemsize, pass_budget)
    mask_tail = (hw % t_hw_m) != 0
    means = pl.pallas_call(
        functools.partial(_mean_kernel, hw=hw, inv_hw=inv_hw,
                          t_hw=t_hw_m, mask_tail=mask_tail),
        out_shape=jax.ShapeDtypeStruct((n, 1, c), jnp.float32),
        grid_spec=pltpu.PrefetchScalarGridSpec(
            num_scalar_prefetch=0,
            grid=(n, pl.cdiv(hw, t_hw_m)),       # reduction axis innermost
            in_specs=[pl.BlockSpec((1, c, t_hw_m), lambda i, k: (i, 0, k))],
            out_specs=pl.BlockSpec((1, 1, c), lambda i, k: (i, 0, 0)),
            scratch_shapes=[pltpu.VMEM((1, c), jnp.float32)],
        ),
        compiler_params=_compiler_params(("parallel", "arbitrary")),
        cost_estimate=pl.CostEstimate(
            flops=n * c * hw,
            transcendentals=0,
            bytes_accessed=n * c * hw * itemsize + n * c * 4,
        ),
    )(x3)

    # Tiny excitation hoisted to plain JAX (O(N*C*C_red)) so the Pallas
    # streaming passes keep both TensorCores busy on v7x.
    y = means.reshape(n, c)
    hid = jnp.maximum(
        lax.dot_general(y, w1, (((1,), (1,)), ((), ())),
                        preferred_element_type=jnp.float32), 0.0)
    gate = jax.nn.sigmoid(
        lax.dot_general(hid, w2, (((1,), (1,)), ((), ())),
                        preferred_element_type=jnp.float32))

    # Pass B: lane-dense per-channel scale on the (N*C, HW) view.
    t_nc, t_hw_s = _choose_scale_tiles(nc, hw, itemsize, pass_budget)
    x2 = x.reshape(nc, hw)
    g2 = gate.reshape(nc, 1)
    out2 = pl.pallas_call(
        _scale_kernel,
        out_shape=jax.ShapeDtypeStruct((nc, hw), x.dtype),
        grid_spec=pltpu.PrefetchScalarGridSpec(
            num_scalar_prefetch=0,
            grid=(pl.cdiv(nc, t_nc), pl.cdiv(hw, t_hw_s)),
            in_specs=[
                pl.BlockSpec((t_nc, t_hw_s), lambda i, j: (i, j)),
                pl.BlockSpec((t_nc, 1), lambda i, j: (i, 0)),
            ],
            out_specs=pl.BlockSpec((t_nc, t_hw_s), lambda i, j: (i, j)),
        ),
        compiler_params=_compiler_params(("parallel", "parallel")),
        cost_estimate=pl.CostEstimate(
            flops=n * c * hw,
            transcendentals=0,
            bytes_accessed=2 * n * c * hw * itemsize + n * c * 4,
        ),
    )(x2, g2)
    return out2.reshape(n, c, h, w)


def se_block_ref(x, w1, w2):
    """Pure-JAX reference matching the PyTorch forward."""
    y = jnp.mean(x, axis=(2, 3))                      # (N, C)
    hid = jnp.maximum(y @ w1.T, 0.0)                  # (N, C//r)
    s = jax.nn.sigmoid(hid @ w2.T)                    # (N, C)
    return x * s[:, :, None, None]


if __name__ == "__main__":
    def make_inputs(key, n, c, h, w, r):
        c_red = max(c // r, 1)
        kx, k1, k2 = jax.random.split(key, 3)
        x = jax.random.normal(kx, (n, c, h, w), dtype=jnp.float32)
        w1 = 0.1 * jax.random.normal(k1, (c_red, c), dtype=jnp.float32)
        w2 = 0.1 * jax.random.normal(k2, (c, c_red), dtype=jnp.float32)
        return x, w1, w2

    # Primary config mirrors SEblock(n_channels=4, r=2) on a (2, 4, 16, 16) input.
    x, w1, w2 = make_inputs(jax.random.PRNGKey(0), 2, 4, 16, 16, 2)
    out = jax.block_until_ready(se_block(x, w1, w2))
    ref = se_block_ref(x, w1, w2)
    assert out.shape == x.shape
    assert jnp.allclose(out, ref, atol=1e-5, rtol=1e-5), "fused path mismatch"

    # Fused path on more shapes (multi-step batch grid, odd spatial sizes).
    for cfg, key in zip([(2, 4, 48, 48, 2), (3, 4, 10, 10, 2)],
                        jax.random.split(jax.random.PRNGKey(1), 2)):
        xi, a, b = make_inputs(key, *cfg)
        oi = jax.block_until_ready(se_block(xi, a, b))
        assert jnp.allclose(oi, se_block_ref(xi, a, b), atol=1e-5, rtol=1e-5), \
            "fused path mismatch"

    # Two-pass fallback (large-activation path), including the masked /
    # non-dividing-tile case exercised with an artificially tiny budget.
    for cfg, budget, key in zip(
        [(2, 4, 48, 48, 2), (3, 4, 10, 10, 2), (2, 8, 40, 40, 2)],
        [None, None, 32 * 1024],
        jax.random.split(jax.random.PRNGKey(2), 3),
    ):
        xi, a, b = make_inputs(key, *cfg)
        oi = jax.block_until_ready(
            se_block(xi, a, b, force_two_pass=True, block_budget_bytes=budget))
        assert jnp.allclose(oi, se_block_ref(xi, a, b), atol=1e-5, rtol=1e-5), \
            "two-pass path mismatch"

    print("KERNEL_OK")
</pallas_src>

<mosaic_0001>
module attributes {stable_mosaic.version = 11 : i64} {
  func.func @_fused_se_kernel(%arg0: i32, %arg1: memref<1x4x256xf32, #tpu.memory_space<vmem>>, %arg2: memref<2x4xf32, #tpu.memory_space<vmem>>, %arg3: memref<4x2xf32, #tpu.memory_space<vmem>>, %arg4: memref<1x4x256xf32, #tpu.memory_space<vmem>>) attributes {dimension_semantics = [#tpu.dimension_semantics<parallel>], iteration_bounds = array<i64: 2>, scalar_prefetch = 0 : i64, scratch_operands = 0 : i64, tpu.core_type = #tpu.core_type<tc>, window_params = [{transform_indices = @transform_0, window_bounds = array<i64: 1, 4, 256>}, {pipeline_mode = #tpu.pipeline_mode<synchronous>, transform_indices = @transform_1, window_bounds = array<i64: 2, 4>}, {pipeline_mode = #tpu.pipeline_mode<synchronous>, transform_indices = @transform_2, window_bounds = array<i64: 4, 2>}, {transform_indices = @transform_3, window_bounds = array<i64: 1, 4, 256>}]} {
    %c0 = arith.constant 0 : index
    %c0_0 = arith.constant 0 : index
    %c0_1 = arith.constant 0 : index
    %0 = vector.load %arg1[%c0, %c0_0, %c0_1] : memref<1x4x256xf32, #tpu.memory_space<vmem>>, vector<1x4x256xf32>
    %cst = arith.constant dense<0.000000e+00> : vector<1x4xf32>
    %1 = vector.multi_reduction <add>, %0, %cst [2] : vector<1x4x256xf32> to vector<1x4xf32>
    %cst_2 = arith.constant 3.906250e-03 : f32
    %2 = vector.broadcast %cst_2 : f32 to vector<1x4xf32>
    %3 = arith.mulf %1, %2 : vector<1x4xf32>
    %c0_3 = arith.constant 0 : index
    %c0_4 = arith.constant 0 : index
    %4 = vector.load %arg2[%c0_3, %c0_4] : memref<2x4xf32, #tpu.memory_space<vmem>>, vector<2x4xf32>
    %cst_5 = arith.constant dense<0.000000e+00> : vector<1x2xf32>
    %5 = tpu.matmul %3, %4, %cst_5 {dimension_numbers = #tpu.dot_dimension_numbers<[1], [1], [0], [0], [0, 0, 1, 0], [], []>} : vector<1x4xf32>, vector<2x4xf32>, vector<1x2xf32> -> vector<1x2xf32>
    %cst_6 = arith.constant 0.000000e+00 : f32
    %6 = vector.broadcast %cst_6 : f32 to vector<1x2xf32>
    %7 = arith.maximumf %5, %6 : vector<1x2xf32>
    %c0_7 = arith.constant 0 : index
    %c0_8 = arith.constant 0 : index
    %8 = vector.load %arg3[%c0_7, %c0_8] : memref<4x2xf32, #tpu.memory_space<vmem>>, vector<4x2xf32>
    %cst_9 = arith.constant dense<0.000000e+00> : vector<1x4xf32>
    %9 = tpu.matmul %7, %8, %cst_9 {dimension_numbers = #tpu.dot_dimension_numbers<[1], [1], [0], [0], [0, 0, 1, 0], [], []>} : vector<1x2xf32>, vector<4x2xf32>, vector<1x4xf32> -> vector<1x4xf32>
    %10 = arith.negf %9 : vector<1x4xf32>
    %11 = math.exp %10 : vector<1x4xf32>
    %cst_10 = arith.constant 1.000000e+00 : f32
    %12 = vector.broadcast %cst_10 : f32 to vector<1x4xf32>
    %13 = arith.addf %12, %11 : vector<1x4xf32>
    %14 = arith.divf %12, %13 : vector<1x4xf32>
    %c0_11 = arith.constant 0 : index
    %c0_12 = arith.constant 0 : index
    %c0_13 = arith.constant 0 : index
    %15 = vector.load %arg1[%c0_11, %c0_12, %c0_13] : memref<1x4x256xf32, #tpu.memory_space<vmem>>, vector<1x4x256xf32>
    %16 = vector.shape_cast %14 : vector<1x4xf32> to vector<1x4x1xf32>
    %17 = vector.broadcast %16 : vector<1x4x1xf32> to vector<1x4x256xf32>
    %18 = arith.mulf %15, %17 : vector<1x4x256xf32>
    %c0_14 = arith.constant 0 : index
    %c0_15 = arith.constant 0 : index
    %c0_16 = arith.constant 0 : index
    %19 = vector.load %arg4[%c0_14, %c0_15, %c0_16] : memref<1x4x256xf32, #tpu.memory_space<vmem>>, vector<1x4x256xf32>
    tpu.vector_store %arg4[%c0_14, %c0_15, %c0_16], %18 {strides = array<i32>} : memref<1x4x256xf32, #tpu.memory_space<vmem>>, vector<1x4x256xf32>,
    return
  }
  func.func @transform_0(%arg0: i32) -> (i32, i32, i32) {
    %c0_i32 = arith.constant 0 : i32
    %c0_i32_0 = arith.constant 0 : i32
    %c0_i32_1 = arith.constant 0 : i32
    return %arg0, %c0_i32, %c0_i32_0 : i32, i32, i32
  }
  func.func @transform_1(%arg0: i32) -> (i32, i32) {
    %c0_i32 = arith.constant 0 : i32
    %c0_i32_0 = arith.constant 0 : i32
    %c0_i32_1 = arith.constant 0 : i32
    return %c0_i32, %c0_i32_0 : i32, i32
  }
  func.func @transform_2(%arg0: i32) -> (i32, i32) {
    %c0_i32 = arith.constant 0 : i32
    %c0_i32_0 = arith.constant 0 : i32
    %c0_i32_1 = arith.constant 0 : i32
    return %c0_i32, %c0_i32_0 : i32, i32
  }
  func.func @transform_3(%arg0: i32) -> (i32, i32, i32) {
    %c0_i32 = arith.constant 0 : i32
    %c0_i32_0 = arith.constant 0 : i32
    %c0_i32_1 = arith.constant 0 : i32
    return %arg0, %c0_i32, %c0_i32_0 : i32, i32, i32
  }
}

</mosaic_0001>

<llo_original>
// kernel: tpu_custom_call.1
$region0: #{tpu_custom_call.1}
  #allocation0 [shape = 'u32[]', space=smem, size = 0x4, offset = 0x4, fixed_abs, tag = 'smem constant byte address 0x4 - core index']
  #allocation1 [shape = 'u32[144,128]{1,0:T(1,128)}', space=vmem, size = 0x12000, scoped, tag = 'internal scratch']
  %s0 = inlined_call_operand.hbm [shape: f32[2,4,256], index: 0, kind: input, shape index: {}]
  %s1 = inlined_call_operand.vmem [shape: f32[2,4], index: 1, kind: input, shape index: {}]
  %s2 = inlined_call_operand.vmem [shape: f32[4,2], index: 2, kind: input, shape index: {}]
  %s3 = inlined_call_operand.hbm [shape: f32[2,4,256], index: 3, kind: output, shape index: {}]
  %s4 = sld [smem:[#allocation0]]
  $region49: #{tpu_custom_call.1} parent=0
    _
  %s6 = ssub.s32 1, %s4
  %s7 = scalar_select 0, %s6, %s4
  $region1: #{tpu_custom_call.1} parent=0
    #allocation2 [shape = 'u8[8192]{0}', space=vmem, size = 0x2000, scoped, tag = 'input window, operand 0']
    #allocation3 [shape = 's32[2]{0}', space=sflag, size = 0x8, scoped, tag = 'scoped memory for tpu_custom_call.1']
    #allocation4 [shape = 's32[2]{0}', space=sflag, size = 0x8, scoped, tag = 'scoped memory for tpu_custom_call.1']
    #allocation5 [shape = 'u8[8192]{0}', space=vmem, size = 0x2000, scoped, tag = 'output window, operand 0']
    %8 = vsyncpa [#allocation3], 0
    %s9 = scalar_lea.sflag [#allocation3], 1
    %10 = vsyncpa %s9, 0
    %11 = vsyncpa [#allocation4], 0
    %s12 = scalar_lea.sflag [#allocation4], 1
    %13 = vsyncpa %s12, 0
    loop: start=0, step=1, limit=4
    $region2: #{tpu_custom_call.1} parent=1 // loop_pre_header
      _
    $region3: #{tpu_custom_call.1} parent=1 // loop_header
      %s15 = sphi 0, %s19
      %p16 = scmp.ge.s32.totalorder %s15, 4
      %s25 = sphi 0, %s27
      %s28 = sphi 0, %s25
      %s29 = sphi 0, %s28
      %s45 = sphi 0, %s29
      %s49 = sphi 0, %s49
      %s51 = sphi 0, %s49
      %s52 = sphi 0, %s51
      %s66 = sphi 0, %s52
      %s70 = sphi 0, %s70
      %s72 = sphi 0, %s70
      %s73 = sphi 0, %s72
      %s87 = sphi 0, %s73
      %s93 = sphi 0, %s95
      %s96 = sphi 0, %s93
      %s97 = sphi 0, %s96
      %s113 = sphi 0, %s97
    $region4: #{tpu_custom_call.1} parent=1 // loop_header_branch
      %18 = sbr.rel (%p16) target = $region8
    $region5: #{tpu_custom_call.1} parent=1 // loop_body
      %s20 = ssub.s32 %s15, 1
      %s21 = ssub.s32 %s15, 2
      %s22 = sadd.s32 %s15, 1
      %s23 = ssub.s32 %s15, %s22
      %p24 = scmp.eq.s32.totalorder %s23, 0
      %s26 = sadd.s32 %s25, 1
      %s27 = scalar_select %p24, %s25, %s26
      %p30 = pneg %p24
      %p31 = scmp.eq.s32.totalorder %s15, 1
      %p32 = por %p30, %p31
      %p33 = scmp.ne.s32.totalorder %s25, %s28
      %p34 = scmp.eq.s32.totalorder %s15, 0
      %p35 = por %p33, %p34
      %p36 = scmp.ne.s32.totalorder %s25, %s28
      %p37 = scmp.eq.s32.totalorder %s20, 1
      %p38 = por %p36, %p37
      %p39 = scmp.ne.s32.totalorder %s28, %s29
      %p40 = scmp.eq.s32.totalorder %s20, 0
      %p41 = por %p39, %p40
      %p42 = scmp.ne.s32.totalorder %s28, %s29
      %p43 = scmp.eq.s32.totalorder %s21, 1
      %p44 = por %p42, %p43
      %p46 = scmp.ne.s32.totalorder %s29, %s45
      %p47 = scmp.eq.s32.totalorder %s21, 0
      %p48 = por %p46, %p47
      %s50 = sadd.s32 %s49, 1
      %p53 = scmp.eq.s32.totalorder %s15, 1
      %p54 = scmp.ne.s32.totalorder %s49, %s51
      %p55 = scmp.eq.s32.totalorder %s15, 0
      %p56 = por %p54, %p55
      %p57 = scmp.ne.s32.totalorder %s49, %s51
      %p58 = scmp.eq.s32.totalorder %s20, 1
      %p59 = por %p57, %p58
      %p60 = scmp.ne.s32.totalorder %s51, %s52
      %p61 = scmp.eq.s32.totalorder %s20, 0
      %p62 = por %p60, %p61
      %p63 = scmp.ne.s32.totalorder %s51, %s52
      %p64 = scmp.eq.s32.totalorder %s21, 1
      %p65 = por %p63, %p64
      %p67 = scmp.ne.s32.totalorder %s52, %s66
      %p68 = scmp.eq.s32.totalorder %s21, 0
      %p69 = por %p67, %p68
      %s71 = sadd.s32 %s70, 1
      %p74 = scmp.eq.s32.totalorder %s15, 1
      %p75 = scmp.ne.s32.totalorder %s70, %s72
      %p76 = scmp.eq.s32.totalorder %s15, 0
      %p77 = por %p75, %p76
      %p78 = scmp.ne.s32.totalorder %s70, %s72
      %p79 = scmp.eq.s32.totalorder %s20, 1
      %p80 = por %p78, %p79
      %p81 = scmp.ne.s32.totalorder %s72, %s73
      %p82 = scmp.eq.s32.totalorder %s20, 0
      %p83 = por %p81, %p82
      %p84 = scmp.ne.s32.totalorder %s72, %s73
      %p85 = scmp.eq.s32.totalorder %s21, 1
      %p86 = por %p84, %p85
      %p88 = scmp.ne.s32.totalorder %s73, %s87
      %p89 = scmp.eq.s32.totalorder %s21, 0
      %p90 = por %p88, %p89
      %s91 = ssub.s32 %s15, %s22
      %p92 = scmp.eq.s32.totalorder %s91, 0
      %s94 = sadd.s32 %s93, 1
      %s95 = scalar_select %p92, %s93, %s94
      %p98 = pneg %p92
      %p99 = scmp.eq.s32.totalorder %s15, 1
      %p100 = por %p98, %p99
      %p101 = scmp.ne.s32.totalorder %s93, %s96
      %p102 = scmp.eq.s32.totalorder %s15, 0
      %p103 = por %p101, %p102
      %p104 = scmp.ne.s32.totalorder %s93, %s96
      %p105 = scmp.eq.s32.totalorder %s20, 1
      %p106 = por %p104, %p105
      %p107 = scmp.ne.s32.totalorder %s96, %s97
      %p108 = scmp.eq.s32.totalorder %s20, 0
      %p109 = por %p107, %p108
      %p110 = scmp.ne.s32.totalorder %s96, %s97
      %p111 = scmp.eq.s32.totalorder %s21, 1
      %p112 = por %p110, %p111
      %p114 = scmp.ne.s32.totalorder %s97, %s113
      %p115 = scmp.eq.s32.totalorder %s21, 0
      %p116 = por %p114, %p115
      %p117 = scmp.le.s32.totalorder 1, %s15
      %p118 = scmp.lt.s32.totalorder %s15, 3
      %p119 = pnand %p117, %p118
      %p120 = pneg %p119
      // Predicated region
      $region9: #{tpu_custom_call.1} parent=5 // pred_check
        _
      $region10: #{tpu_custom_call.1} parent=5 // pred_check_branch
        %122 = sbr.rel (%p119) target = $region12
      $region11: #{tpu_custom_call.1} parent=5 // pred_region
        %s123 = ssub.s32 %s15, 1
        // Predicated region
        $region13: #{tpu_custom_call.1} parent=11 // pred_check
          %p124 = pneg %p62
        $region14: #{tpu_custom_call.1} parent=11 // pred_check_branch
          %126 = sbr.rel (%p124) target = $region16
        $region15: #{tpu_custom_call.1} parent=11 // pred_region
          _
        $region16: #{tpu_custom_call.1} parent=11 // pred_fallthru
          _
        // Predicated region
        $region17: #{tpu_custom_call.1} parent=11 // pred_check
          %p127 = pneg %p83
        $region18: #{tpu_custom_call.1} parent=11 // pred_check_branch
          %129 = sbr.rel (%p127) target = $region20
        $region19: #{tpu_custom_call.1} parent=11 // pred_region
          _
        $region20: #{tpu_custom_call.1} parent=11 // pred_fallthru
          _
      $region12: #{tpu_custom_call.1} parent=5 // pred_fallthru
        _
      %p130 = scmp.lt.s32.totalorder %s15, 2
      // Predicated region
      $region21: #{tpu_custom_call.1} parent=5 // pred_check
        %p131 = pneg %p130
      $region22: #{tpu_custom_call.1} parent=5 // pred_check_branch
        %133 = sbr.rel (%p131) target = $region24
      $region23: #{tpu_custom_call.1} parent=5 // pred_region
        // Predicated region
        $region25: #{tpu_custom_call.1} parent=23 // pred_check
          %p134 = pneg %p35
        $region26: #{tpu_custom_call.1} parent=23 // pred_check_branch
          %136 = sbr.rel (%p134) target = $region28
        $region27: #{tpu_custom_call.1} parent=23 // pred_region
          %s137 = sand.u32 %s25, 1
          %s138 = scalar_lea.sflag [#allocation3], %s137
          %s139 = sand.u32 %s25, 1
          %s140 = smul.addr %s139, 8
          %s141 = scalar_lea.vmem [#allocation2], %s140
          %s143 = ssub.s32 128, 128
          %144 = vsyncadd %s138, %s143
          %s145 = smul.addr %s15, 2
          %s146 = smul.addr %s145, 64
          %s147 = scalar_lea.hbm %s0, %s146
          %s149 = sshll.u32 %s141, 4
          %s150 = int_to_ptr.vmem [resolvable:$true] %s149
          %152 = dma.hbm_to_vmem [thread:$0]  %s147, 128, %s150, %s138
        $region28: #{tpu_custom_call.1} parent=23 // pred_fallthru
          _
      $region24: #{tpu_custom_call.1} parent=5 // pred_fallthru
        _
      %p153 = scmp.le.s32.totalorder 1, %s15
      %p154 = scmp.lt.s32.totalorder %s15, 3
      %p155 = pnand %p153, %p154
      %p156 = pneg %p155
      // Predicated region
      $region29: #{tpu_custom_call.1} parent=5 // pred_check
        _
      $region30: #{tpu_custom_call.1} parent=5 // pred_check_branch
        %158 = sbr.rel (%p155) target = $region32
      $region31: #{tpu_custom_call.1} parent=5 // pred_region
        %s159 = ssub.s32 %s15, 1
        %s160 = sand.u32 %s28, 1
        %s161 = scalar_lea.sflag [#allocation3], %s160
        %s162 = sand.u32 %s28, 1
        %s163 = smul.addr %s162, 8
        %s164 = scalar_lea.vmem [#allocation2], %s163
        // Predicated region
        $region33: #{tpu_custom_call.1} parent=31 // pred_check
          %p165 = pneg %p41
        $region34: #{tpu_custom_call.1} parent=31 // pred_check_branch
          %167 = sbr.rel (%p165) target = $region36
        $region35: #{tpu_custom_call.1} parent=31 // pred_region
          %168 = dma.done %s161, 128
        $region36: #{tpu_custom_call.1} parent=31 // pred_fallthru
          _
        %s169 = sand.u32 %s28, 1
        %s170 = scalar_lea.sflag [#allocation3], %s169
        %s171 = sand.u32 %s28, 1
        %s172 = smul.addr %s171, 8
        %s173 = scalar_lea.vmem [#allocation2], %s172
        %p174 = pneg %p41
        %p175 = pneg %p38
        %p176 = pneg %p62
        %p177 = pneg %p59
        %p178 = pneg %p83
        %p179 = pneg %p80
        %p180 = pneg %p109
        %p181 = pneg %p106
        %s182 = sand.u32 %s96, 1
        %s183 = scalar_lea.sflag [#allocation4], %s182
        %s184 = sand.u32 %s96, 1
        %s185 = smul.addr %s184, 8
        %s186 = scalar_lea.vmem [#allocation5], %s185
        %v187 = vld [vmem:[%s164] sm:$0xff]
        %v189 = vcombine.high %v187, %v187
        %vm191 = vcmask 1043456
        %v192 = vsel %vm191, %v187, 0.0
        %v193 = vsel %vm191, %v189, 0.0
        %v194 = vadd.f32 %v192, %v193
        %195 = vadd.xlane.f32.xlu0 %v194
        %v196 = vpop.xlane.xlu0 %195
        %v197 = vmul.f32 %v196, 0.00390625
        %v198 = vld [vmem:[%s1] sm:$0x3]
        %v200 = vlaneseq
        %v201 = vand.u32 %v200, 127
        %v202 = vlaneseq
        %v203 = vshrl.u32 %v202, 7
        %v204 = vsub.s32 %v201, %v203
        %v205 = vrot.slane %v197, %v204
        %vm206 = vcmask 31744
        %v207 = vsel %vm206, %v205, 0
        %v210 = vsel %vm206, %v198, 0
        %212 = vmatprep.subr.mxu0 0.0
        %213 = vmatpush1.xpose.msra.mxu0 %v210
        %214 = vmatprep.subr.mxu0 0.0
        %215 = vmatpush1.xpose.msra.mxu0 0.0
        %216 = vmatprep.subr.mxu0 0.0
        %217 = vmatpush1.xpose.msra.mxu0 0.0
        %218 = vmatprep.subr.mxu0 0.0
        %219 = vmatpush1.xpose.msra.mxu0 0.0
        %220 = vmatprep.subr.mxu0 0.0
        %221 = vmatpush1.xpose.msra.mxu0 0.0
        %222 = vmatprep.subr.mxu0 0.0
        %223 = vmatpush1.xpose.msra.mxu0 0.0
        %224 = vmatprep.subr.mxu0 0.0
        %225 = vmatpush1.xpose.msra.mxu0 0.0
        %226 = vmatprep.subr.mxu0 0.0
        %227 = vmatpush1.xpose.msra.mxu0 0.0
        %228 = vmatprep.subr.mxu0 0.0
        %229 = vmatpush1.xpose.msra.mxu0 0.0
        %230 = vmatprep.subr.mxu0 0.0
        %231 = vmatpush1.xpose.msra.mxu0 0.0
        %232 = vmatprep.subr.mxu0 0.0
        %233 = vmatpush1.xpose.msra.mxu0 0.0
        %234 = vmatprep.subr.mxu0 0.0
        %235 = vmatpush1.xpose.msra.mxu0 0.0
        %236 = vmatprep.subr.mxu0 0.0
        %237 = vmatpush1.xpose.msra.mxu0 0.0
        %238 = vmatprep.subr.mxu0 0.0
        %239 = vmatpush1.xpose.msra.mxu0 0.0
        %240 = vmatprep.subr.mxu0 0.0
        %241 = vmatpush1.xpose.msra.mxu0 0.0
        %242 = vmatprep.subr.mxu0 0.0
        %243 = vmatpush1.xpose.msra.mxu0 0.0
        %244 = vmatprep.subr.mxu0 0.0
        %245 = vmatpush1.xpose.msra.mxu0 0.0
        %246 = vmatprep.subr.mxu0 0.0
        %247 = vmatpush1.xpose.msra.mxu0 0.0
        %248 = vmatprep.subr.mxu0 0.0
        %249 = vmatpush1.xpose.msra.mxu0 0.0
        %250 = vmatprep.subr.mxu0 0.0
        %251 = vmatpush1.xpose.msra.mxu0 0.0
        %252 = vmatprep.subr.mxu0 0.0
        %253 = vmatpush1.xpose.msra.mxu0 0.0
        %254 = vmatprep.subr.mxu0 0.0
        %255 = vmatpush1.xpose.msra.mxu0 0.0
        %256 = vmatprep.subr.mxu0 0.0
        %257 = vmatpush1.xpose.msra.mxu0 0.0
        %258 = vmatprep.subr.mxu0 0.0
        %259 = vmatpush1.xpose.msra.mxu0 0.0
        %260 = vmatprep.subr.mxu0 0.0
        %261 = vmatpush1.xpose.msra.mxu0 0.0
        %262 = vmatprep.subr.mxu0 0.0
        %263 = vmatpush1.xpose.msra.mxu0 0.0
        %264 = vmatprep.subr.mxu0 0.0
        %265 = vmatpush1.xpose.msra.mxu0 0.0
        %266 = vmatprep.subr.mxu0 0.0
        %267 = vmatpush1.xpose.msra.mxu0 0.0
        %268 = vmatprep.subr.mxu0 0.0
        %269 = vmatpush1.xpose.msra.mxu0 0.0
        %270 = vmatprep.subr.mxu0 0.0
        %271 = vmatpush1.xpose.msra.mxu0 0.0
        %272 = vmatprep.subr.mxu0 0.0
        %273 = vmatpush1.xpose.msra.mxu0 0.0
        %274 = vmatprep.subr.mxu0 0.0
        %275 = vmatpush1.xpose.msra.mxu0 0.0
        %276 = vmatprep.mubr.f32.mxu0 0.0
        %277 = vmatmul.mubr.f32.gmra.mrb[0].mxu0 %v207
        %v278 = vpop.f32.mrb[0].mxu0
        %v279 = vadd.f32 0.0, %v278
        %v280 = vpop.f32.mrb[0].mxu0
        %281 = vdwg.mxu0
        %v282 = vmax.f32 %v279, 0.0
        %v283 = vld [vmem:[%s2] sm:$0xf]
        %vm284 = vcmask 15360
        %v286 = vsel %vm284, %v282, 0
        %v289 = vsel %vm284, %v283, 0
        %291 = vmatprep.subr.mxu0 0.0
        %292 = vmatpush1.xpose.msra.mxu0 %v289
        %293 = vmatprep.subr.mxu0 0.0
        %294 = vmatpush1.xpose.msra.mxu0 0.0
        %295 = vmatprep.subr.mxu0 0.0
        %296 = vmatpush1.xpose.msra.mxu0 0.0
        %297 = vmatprep.subr.mxu0 0.0
        %298 = vmatpush1.xpose.msra.mxu0 0.0
        %299 = vmatprep.subr.mxu0 0.0
        %300 = vmatpush1.xpose.msra.mxu0 0.0
        %301 = vmatprep.subr.mxu0 0.0
        %302 = vmatpush1.xpose.msra.mxu0 0.0
        %303 = vmatprep.subr.mxu0 0.0
        %304 = vmatpush1.xpose.msra.mxu0 0.0
        %305 = vmatprep.subr.mxu0 0.0
        %306 = vmatpush1.xpose.msra.mxu0 0.0
        %307 = vmatprep.subr.mxu0 0.0
        %308 = vmatpush1.xpose.msra.mxu0 0.0
        %309 = vmatprep.subr.mxu0 0.0
        %310 = vmatpush1.xpose.msra.mxu0 0.0
        %311 = vmatprep.subr.mxu0 0.0
        %312 = vmatpush1.xpose.msra.mxu0 0.0
        %313 = vmatprep.subr.mxu0 0.0
        %314 = vmatpush1.xpose.msra.mxu0 0.0
        %315 = vmatprep.subr.mxu0 0.0
        %316 = vmatpush1.xpose.msra.mxu0 0.0
        %317 = vmatprep.subr.mxu0 0.0
        %318 = vmatpush1.xpose.msra.mxu0 0.0
        %319 = vmatprep.subr.mxu0 0.0
        %320 = vmatpush1.xpose.msra.mxu0 0.0
        %321 = vmatprep.subr.mxu0 0.0
        %322 = vmatpush1.xpose.msra.mxu0 0.0
        %323 = vmatprep.subr.mxu0 0.0
        %324 = vmatpush1.xpose.msra.mxu0 0.0
        %325 = vmatprep.subr.mxu0 0.0
        %326 = vmatpush1.xpose.msra.mxu0 0.0
        %327 = vmatprep.subr.mxu0 0.0
        %328 = vmatpush1.xpose.msra.mxu0 0.0
        %329 = vmatprep.subr.mxu0 0.0
        %330 = vmatpush1.xpose.msra.mxu0 0.0
        %331 = vmatprep.subr.mxu0 0.0
        %332 = vmatpush1.xpose.msra.mxu0 0.0
        %333 = vmatprep.subr.mxu0 0.0
        %334 = vmatpush1.xpose.msra.mxu0 0.0
        %335 = vmatprep.subr.mxu0 0.0
        %336 = vmatpush1.xpose.msra.mxu0 0.0
        %337 = vmatprep.subr.mxu0 0.0
        %338 = vmatpush1.xpose.msra.mxu0 0.0
        %339 = vmatprep.subr.mxu0 0.0
        %340 = vmatpush1.xpose.msra.mxu0 0.0
        %341 = vmatprep.subr.mxu0 0.0
        %342 = vmatpush1.xpose.msra.mxu0 0.0
        %343 = vmatprep.subr.mxu0 0.0
        %344 = vmatpush1.xpose.msra.mxu0 0.0
        %345 = vmatprep.subr.mxu0 0.0
        %346 = vmatpush1.xpose.msra.mxu0 0.0
        %347 = vmatprep.subr.mxu0 0.0
        %348 = vmatpush1.xpose.msra.mxu0 0.0
        %349 = vmatprep.subr.mxu0 0.0
        %350 = vmatpush1.xpose.msra.mxu0 0.0
        %351 = vmatprep.subr.mxu0 0.0
        %352 = vmatpush1.xpose.msra.mxu0 0.0
        %353 = vmatprep.subr.mxu0 0.0
        %354 = vmatpush1.xpose.msra.mxu0 0.0
        %355 = vmatprep.mubr.f32.mxu0 0.0
        %356 = vmatmul.mubr.f32.gmra.mrb[0].mxu0 %v286
        %v357 = vpop.f32.mrb[0].mxu0
        %v358 = vadd.f32 0.0, %v357
        %v359 = vpop.f32.mrb[0].mxu0
        %360 = vdwg.mxu0
        %v361 = vxor.u32 %v358, 2147483648
        %v362 = vmul.f32 %v361, 1.442695
        %v363 = vpow.pop %v362
        %v364 = vadd.f32 %v363, 1.0
        %v365 = vrcp.pop %v364
        %v366 = vmul.f32 1.0, %v365
        %v367 = vlaneseq
        %v368 = vshrl.u32 %v367, 7
        %v369 = vsub.s32 0, %v368
        %v370 = vrot.slane %v366, %v369
        %372 = vbcast.lane.b32.xlu0 %v370, 256
        %v373 = vpop.permute.xlu0 %372
        %v376 = vunpack.c.l.s4 839922192
        %v377 = vunpack.c.0.s8 %v376
        %v378 = vlaneseq
        %v379 = vshrl.u32 %v378, 7
        %v380 = vsub.s32 %v377, %v379
        %v381 = vrot.slane %v373, %v380
        %v383 = vmul.f32 %v187, %v381
        %384 = vst [vmem:[%s186] sm:$0xff] %v383
        %s385 = sand.u32 %s96, 1
        %s386 = scalar_lea.sflag [#allocation4], %s385
        %s387 = sand.u32 %s96, 1
        %s388 = smul.addr %s387, 8
        %s389 = scalar_lea.vmem [#allocation5], %s388
        // Predicated region
        $region37: #{tpu_custom_call.1} parent=31 // pred_check
          %p390 = pneg %p106
        $region38: #{tpu_custom_call.1} parent=31 // pred_check_branch
          %392 = sbr.rel (%p390) target = $region40
        $region39: #{tpu_custom_call.1} parent=31 // pred_region
          %s394 = ssub.s32 128, 128
          %395 = vsyncadd %s386, %s394
          %s396 = smul.addr %s20, 2
          %s397 = smul.addr %s396, 64
          %s398 = scalar_lea.hbm %s3, %s397
          %s400 = sshll.u32 %s389, 4
          %s401 = int_to_ptr.vmem [resolvable:$true] %s400
          %403 = dma.vmem_to_hbm [thread:$0]  %s401, 128, %s398, %s386
        $region40: #{tpu_custom_call.1} parent=31 // pred_fallthru
          _
      $region32: #{tpu_custom_call.1} parent=5 // pred_fallthru
        _
      %p404 = scmp.le.s32.totalorder 2, %s15
      // Predicated region
      $region41: #{tpu_custom_call.1} parent=5 // pred_check
        %p405 = pneg %p404
      $region42: #{tpu_custom_call.1} parent=5 // pred_check_branch
        %407 = sbr.rel (%p405) target = $region44
      $region43: #{tpu_custom_call.1} parent=5 // pred_region
        %s408 = ssub.s32 %s15, 2
        // Predicated region
        $region45: #{tpu_custom_call.1} parent=43 // pred_check
          %p409 = pneg %p112
        $region46: #{tpu_custom_call.1} parent=43 // pred_check_branch
          %411 = sbr.rel (%p409) target = $region48
        $region47: #{tpu_custom_call.1} parent=43 // pred_region
          %s412 = sand.u32 %s97, 1
          %s413 = scalar_lea.sflag [#allocation4], %s412
          %s414 = sand.u32 %s97, 1
          %s415 = smul.addr %s414, 8
          %s416 = scalar_lea.vmem [#allocation5], %s415
          %417 = dma.done %s413, 128
        $region48: #{tpu_custom_call.1} parent=43 // pred_fallthru
          _
      $region44: #{tpu_custom_call.1} parent=5 // pred_fallthru
        _
    $region6: #{tpu_custom_call.1} parent=1 // loop_footer
      %s19 = sadd.s32 1, %s15
    $region7: #{tpu_custom_call.1} parent=1 // loop_footer_branch
      %14 = sbr.rel target = $region3
    $region8: #{tpu_custom_call.1} parent=1 // loop_exit
      _
    %418 = vsyncpa [#allocation3], 1
    %s419 = scalar_lea.sflag [#allocation3], 1
    %420 = vsyncpa %s419, 1
    %421 = vsyncpa [#allocation4], 1
    %s422 = scalar_lea.sflag [#allocation4], 1
    %423 = vsyncpa %s422, 1

</llo_original>
